<compile_context>
chip_gen: v7x
topology: tpu7x:2x2x1
jax: 0.10.0
libtpu: 0.0.40
codegen_flags: <defaults>
</compile_context>

<pallas_src>
import functools

import numpy as np
import jax
import jax.numpy as jnp
from jax.experimental import pallas as pl
from jax.experimental.pallas import tpu as pltpu


def _chunker_kernel(mask_ref, change_ref):
    # mask_ref / change_ref: (TB, L) int8 blocks in VMEM, mask values in {0, 1}.
    m = mask_ref[...]
    # prev[:, i] = m[:, i-1]  (lane rotate; wraps at column 0 -- callers ignore
    # column 0).  Mosaic's dynamic rotate only handles 32-bit lanes, so the
    # rotate operand is widened transiently; HBM traffic, the XOR and the
    # stored output all stay int8 (no full-tile iota, no int32 select).
    prev = pltpu.roll(m.astype(jnp.int32), shift=1, axis=1).astype(jnp.int8)
    # mask is strictly {0,1}, so XOR == "not equal" in a single int8 VALU op.
    # Column 0 holds the wrap artifact m[:,0]^m[:,L-1]; host reads columns >= 1.
    change_ref[...] = m ^ prev


@functools.partial(jax.jit, static_argnames=("row_block",))
def chunker_pallas(keep_mask_i8, *, row_block=128):
    """keep_mask_i8: (B, L) int8 of {0,1}.

    Returns `change` (B, L) int8 with change[b, i] = 1 iff i >= 1 and
    keep_mask[b, i] != keep_mask[b, i-1].  Column 0 is a lane-wrap artifact and
    must be ignored by callers (the host path only uses columns >= 1).
    """
    B, L = keep_mask_i8.shape
    # Row grid: a single full-B block when small (block == full dim is always
    # legal), otherwise 128-row blocks (a multiple of the int8-native 32-row
    # sublane pack) so Pallas double-buffers the HBM<->VMEM DMAs against the
    # compute of the current block.  The lane (L) axis stays un-tiled so the
    # rotate's column-0 wrap semantics are unchanged; block sized to fit v5e's
    # 16 MiB / v7x's 32 MiB default scoped VMEM with double buffering.
    tb = B if B <= row_block else row_block
    grid = (pl.cdiv(B, tb),)
    return pl.pallas_call(
        _chunker_kernel,
        out_shape=jax.ShapeDtypeStruct((B, L), jnp.int8),
        grid=grid,
        in_specs=[pl.BlockSpec((tb, L), lambda i: (i, 0))],
        out_specs=pl.BlockSpec((tb, L), lambda i: (i, 0)),
        compiler_params=pltpu.CompilerParams(
            dimension_semantics=("parallel",)),  # row blocks are independent
    )(keep_mask_i8)


def fixed_out_chunker_forward(inp, masks_dict, out_num, mask_special_tokens=True):
    """Pallas-backed equivalent of FixedOutChunker.forward."""
    assert masks_dict is not None
    batch_size = inp.shape[0]
    if not mask_special_tokens:
        keep_mask = np.asarray(masks_dict['padding_mask']) == 1
    else:
        keep_mask = np.asarray(masks_dict['regular_tokens_mask']) == 1
    keep_np = keep_mask.astype(np.int8)

    # Single int8 (B, L) boundary mask from the jitted kernel; np.asarray is the
    # only D2H sync and moves only the data the host loop needs.
    change = np.asarray(chunker_pallas(jnp.asarray(keep_np)))

    indices_to_compact = []
    for b in range(batch_size):
        m = keep_np[b, :]
        L = len(m)
        # Segment boundaries straight from the kernel's transition output
        # (column 0 is a wrap artifact by construction -> only look at i >= 1,
        # exactly mirroring the reference's range(1, len(m))).
        start_stop = [0] + [int(i) for i in (np.nonzero(change[b, 1:])[0] + 1)]
        if m[-1] == 1:
            start_stop.append(L)
        else:
            start_stop.append(max(start_stop) + 1)
        # TODO(synk): per-segment np.linspace/np.unique ragged splitting and the
        # list-of-tuples output have no dense Pallas equivalent; done on host.
        ordered_idxs = []
        for i in range(len(start_stop) - 1):
            start = start_stop[i]
            stop = start_stop[i + 1]
            pts = np.linspace(start, stop, num=out_num + 1, endpoint=True, dtype=int)
            pts = list(np.unique(pts))
            if max(pts) < stop:
                pts.append(stop)
            chunks = [tuple(range(pts[j], pts[j + 1])) for j in range(len(pts) - 1)]
            ordered_idxs.extend(chunks)
        indices_to_compact.append(ordered_idxs)
    return indices_to_compact


def reference_forward(inp, masks_dict, out_num, mask_special_tokens=True):
    """Verbatim numpy port of the PyTorch module's forward (ground truth)."""
    assert masks_dict is not None
    batch_size = inp.shape[0]
    if not mask_special_tokens:
        keep_mask = np.asarray(masks_dict['padding_mask']) == 1
    else:
        keep_mask = np.asarray(masks_dict['regular_tokens_mask']) == 1
    keep_mask = keep_mask.astype(np.int32)
    indices_to_compact = []
    for b in range(batch_size):
        m = keep_mask[b, :]
        start_stop = [0]
        _ = [start_stop.append(i) for i in range(1, len(m)) if m[i] != m[i - 1]]
        if m[-1] == 1:
            start_stop.append(len(m))
        else:
            start_stop.append(max(start_stop) + 1)
        ordered_idxs = []
        for i in range(len(start_stop) - 1):
            start = start_stop[i]
            stop = start_stop[i + 1]
            L_ = np.linspace(start, stop, num=out_num + 1, endpoint=True, dtype=int)
            L_ = list(np.unique(L_))
            if max(L_) < stop:
                L_.append(stop)
            L = [tuple(range(L_[j], L_[j + 1])) for j in range(len(L_) - 1)]
            ordered_idxs.extend(L)
        indices_to_compact.append(ordered_idxs)
    return indices_to_compact


if __name__ == "__main__":
    B, S, D = 2, 16, 32
    OUT_NUM = 3

    key = jax.random.PRNGKey(0)
    k1, k2 = jax.random.split(key)
    inp = jax.random.normal(k1, (B, S, D), jnp.float32)
    regular_tokens_mask = jax.random.bernoulli(k2, 0.6, (B, S)).astype(jnp.uint8)
    padding_mask = jnp.ones((B, S), jnp.uint8)
    masks_dict = {
        'padding_mask': padding_mask,
        'seq_pair_mask': jnp.zeros((B, S), jnp.uint8),
        'regular_tokens_mask': regular_tokens_mask,
    }

    # Run the kernel once explicitly and block on its device result.
    keep_i8 = (np.asarray(regular_tokens_mask) == 1).astype(np.int8)
    change_dev = chunker_pallas(jnp.asarray(keep_i8))
    jax.block_until_ready(change_dev)

    # Full forward vs. the verbatim reference port (both mask modes).
    out = fixed_out_chunker_forward(inp, masks_dict, out_num=OUT_NUM,
                                    mask_special_tokens=True)
    ref = reference_forward(inp, masks_dict, out_num=OUT_NUM,
                            mask_special_tokens=True)
    assert out == ref, f"mismatch:\n{out}\nvs\n{ref}"

    out2 = fixed_out_chunker_forward(inp, masks_dict, out_num=OUT_NUM,
                                     mask_special_tokens=False)
    ref2 = reference_forward(inp, masks_dict, out_num=OUT_NUM,
                             mask_special_tokens=False)
    assert out2 == ref2, f"mismatch:\n{out2}\nvs\n{ref2}"

    print("KERNEL_OK")
</pallas_src>

<mosaic_0001>
module attributes {stable_mosaic.version = 11 : i64} {
  func.func @_chunker_kernel(%arg0: i32, %arg1: memref<2x16xi8, #tpu.memory_space<vmem>>, %arg2: memref<2x16xi8, #tpu.memory_space<vmem>>) attributes {dimension_semantics = [#tpu.dimension_semantics<parallel>], iteration_bounds = array<i64: 1>, scalar_prefetch = 0 : i64, scratch_operands = 0 : i64, tpu.core_type = #tpu.core_type<tc>, window_params = [{transform_indices = @transform_0, window_bounds = array<i64: 2, 16>}, {transform_indices = @transform_1, window_bounds = array<i64: 2, 16>}]} {
    %c0 = arith.constant 0 : index
    %c0_0 = arith.constant 0 : index
    %0 = vector.load %arg1[%c0, %c0_0] : memref<2x16xi8, #tpu.memory_space<vmem>>, vector<2x16xi8>
    %1 = arith.extsi %0 : vector<2x16xi8> to vector<2x16xi32>
    %c1_i32 = arith.constant 1 : i32
    %2 = tpu.dynamic_rotate %1 by %c1_i32 dim 1 : vector<2x16xi32>, i32 -> vector<2x16xi32>
    %3 = arith.trunci %2 : vector<2x16xi32> to vector<2x16xi8>
    %4 = arith.xori %0, %3 : vector<2x16xi8>
    %c0_1 = arith.constant 0 : index
    %c0_2 = arith.constant 0 : index
    %5 = vector.load %arg2[%c0_1, %c0_2] : memref<2x16xi8, #tpu.memory_space<vmem>>, vector<2x16xi8>
    tpu.vector_store %arg2[%c0_1, %c0_2], %4 {strides = array<i32>} : memref<2x16xi8, #tpu.memory_space<vmem>>, vector<2x16xi8>,
    return
  }
  func.func @transform_0(%arg0: i32) -> (i32, i32) {
    %c0_i32 = arith.constant 0 : i32
    %c0_i32_0 = arith.constant 0 : i32
    return %arg0, %c0_i32 : i32, i32
  }
  func.func @transform_1(%arg0: i32) -> (i32, i32) {
    %c0_i32 = arith.constant 0 : i32
    %c0_i32_0 = arith.constant 0 : i32
    return %arg0, %c0_i32 : i32, i32
  }
}

</mosaic_0001>

<llo_original>
// kernel: chunker_pallas.1
$region0: #{chunker_pallas.1}
  #allocation0 [shape = 'u32[]', space=smem, size = 0x4, offset = 0x4, fixed_abs, tag = 'smem constant byte address 0x4 - core index']
  #allocation1 [shape = 'u32[144,128]{1,0:T(1,128)}', space=vmem, size = 0x12000, scoped, tag = 'internal scratch']
  %s0 = inlined_call_operand.hbm [shape: s8[2,16], index: 0, kind: input, shape index: {}]
  %s1 = inlined_call_operand.hbm [shape: s8[2,16], index: 1, kind: output, shape index: {}]
  %s2 = sld [smem:[#allocation0]]
  $region18: #{chunker_pallas.1} parent=0
    _
  %s4 = ssub.s32 1, %s2
  %s5 = scalar_select 0, %s4, %s2
  $region1: #{chunker_pallas.1} parent=0
    #allocation2 [shape = 'u8[512]{0}', space=vmem, size = 0x400, scoped, tag = 'input window, operand 0, single buffered']
    #allocation3 [shape = 's32[1]{0}', space=sflag, size = 0x4, scoped, tag = 'scoped memory for chunker_pallas.1']
    #allocation4 [shape = 's32[1]{0}', space=sflag, size = 0x4, scoped, tag = 'scoped memory for chunker_pallas.1']
    #allocation5 [shape = 'u8[512]{0}', space=vmem, size = 0x400, scoped, tag = 'output window, operand 0, single buffered']
    %6 = vsyncpa [#allocation3], 0
    %7 = vsyncpa [#allocation4], 0
    // Predicated region
    $region2: #{chunker_pallas.1} parent=1 // pred_check
      _
    $region3: #{chunker_pallas.1} parent=1 // pred_check_branch
      %9 = sbr.rel (0) target = $region5
    $region4: #{chunker_pallas.1} parent=1 // pred_region
      %s11 = ssub.s32 16, 16
      %12 = vsyncadd [#allocation3], %s11
      %s14 = sshll.u32 [#allocation2], 4
      %s15 = int_to_ptr.vmem [resolvable:$true] %s14
      %17 = dma.hbm_to_vmem [thread:$0]  %s0, 16, %s15, [#allocation3]
    $region5: #{chunker_pallas.1} parent=1 // pred_fallthru
      _
    // Predicated region
    $region6: #{chunker_pallas.1} parent=1 // pred_check
      _
    $region7: #{chunker_pallas.1} parent=1 // pred_check_branch
      %19 = sbr.rel (0) target = $region9
    $region8: #{chunker_pallas.1} parent=1 // pred_region
      %20 = dma.done [#allocation3], 16
    $region9: #{chunker_pallas.1} parent=1 // pred_fallthru
      _
    %v21 = vld [vmem:[#allocation2] sm:$0x1]
    %v22 = vunpack.c.0.s8 %v21
    %vm23 = vcmask 1047680
    %24 = vrot.lane.b32.xlu0 %v22, 16
    %v25 = vpop.permute.xlu0 %24
    %v26 = vsel %vm23, %v25, %v22
    %27 = vrot.lane.b32.xlu0 %v26, 16
    %v28 = vpop.permute.xlu0 %27
    %v29 = vsel %vm23, %v28, %v22
    %v30 = vpack.c.b16 %v29, %v29
    %v31 = vpack.c.b8 %v30, %v30
    %v33 = vunpack.c.l.s4 1966171168
    %v34 = vunpack.c.0.s8 %v33
    %v35 = vlaneseq
    %v36 = vshrl.u32 %v35, 7
    %v37 = vsub.s32 %v34, %v36
    %v38 = vrot.slane %v31, %v37
    %v40 = vunpack.c.l.s4 1966171168
    %v41 = vunpack.c.0.s8 %v40
    %v42 = vlaneseq
    %v43 = vshrl.u32 %v42, 7
    %v44 = vsub.s32 %v41, %v43
    %v45 = vrot.slane %v38, %v44
    %46 = vrot.lane.b32.xlu0 %v45, 113
    %v47 = vpop.permute.xlu0 %46
    %v48 = vxor.u32 %v21, %v47
    %vm49 = vcmask 122880
    %vm50 = vsmask.f32 256
    %vm51 = vmand %vm49, %vm50
    %v52 = vld [vmem:[#allocation5] sm:$0x1]
    %v53 = vsel %vm51, %v48, %v52
    %54 = vst [vmem:[#allocation5] sm:$0x1] %v53
    // Predicated region
    $region10: #{chunker_pallas.1} parent=1 // pred_check
      _
    $region11: #{chunker_pallas.1} parent=1 // pred_check_branch
      %56 = sbr.rel (0) target = $region13
    $region12: #{chunker_pallas.1} parent=1 // pred_region
      %s58 = ssub.s32 16, 16
      %59 = vsyncadd [#allocation4], %s58
      %s61 = sshll.u32 [#allocation5], 4
      %s62 = int_to_ptr.vmem [resolvable:$true] %s61
      %64 = dma.vmem_to_hbm [thread:$0]  %s62, 16, %s1, [#allocation4]
    $region13: #{chunker_pallas.1} parent=1 // pred_fallthru
      _
    // Predicated region
    $region14: #{chunker_pallas.1} parent=1 // pred_check
      _
    $region15: #{chunker_pallas.1} parent=1 // pred_check_branch
      %66 = sbr.rel (0) target = $region17
    $region16: #{chunker_pallas.1} parent=1 // pred_region
      %67 = dma.done [#allocation4], 16
    $region17: #{chunker_pallas.1} parent=1 // pred_fallthru
      _
    %68 = vsyncpa [#allocation3], 1
    %69 = vsyncpa [#allocation4], 1

</llo_original>
